<compile_context>
chip_gen: v5e
topology: v5e:2x2
jax: 0.10.0
libtpu: 0.0.40
codegen_flags: <defaults>
</compile_context>

<pallas_src>
import math
from functools import partial

import jax
import jax.numpy as jnp
from jax.experimental import pallas as pl
from jax.experimental.pallas import tpu as pltpu

HI = jax.lax.Precision.HIGHEST


def msa_kernel(x_ref,                     # (1, N, F)   VMEM
               wq_ref, bq_ref,            # (F, F), (1, F)  block-diag packed, scale folded
               wk_ref, bk_ref,
               wv_ref, bv_ref,
               wo_ref, bo_ref,            # (F, F), (1, F)  o-proj fused with head shuffle
               mask_ref,                  # (H*N, F) head-block selection mask
               out_ref,                   # (1, N, F)
               *, head, seq):
    x = x_ref[0]                                          # (N, F)

    # ---- packed (block-diagonal) Q/K/V projections: one matmul each ----
    # (1/sqrt(feats) already folded into wq/bq host-side)
    q = jnp.dot(x, wq_ref[...], preferred_element_type=jnp.float32) + bq_ref[...]
    k = jnp.dot(x, wk_ref[...], preferred_element_type=jnp.float32) + bk_ref[...]
    v = jnp.dot(x, wv_ref[...], preferred_element_type=jnp.float32) + bv_ref[...]

    # ---- per-head attention without per-head matmuls -------------------
    # Stack heads on the sublane axis: q_blk[g*N+i, :] keeps only head g's
    # feature block of q[i, :], so a single (H*N,F)@(F,N) matmul produces
    # every head's score matrix stacked on rows:
    #   s[g*N+i, j] = <q_g[i], k_g[j]> / sqrt(F)
    mask = mask_ref[...]                                  # (H*N, F)
    q_blk = jnp.concatenate([q] * head, axis=0) * mask    # (H*N, F), sublane concat only
    s = jax.lax.dot_general(q_blk, k, (((1,), (1,)), ((), ())),
                            preferred_element_type=jnp.float32)        # (H*N, N)
    s = s - jnp.max(s, axis=-1, keepdims=True)
    e = jnp.exp(s)
    p = e * pl.reciprocal(jnp.sum(e, axis=-1, keepdims=True), approx=True)

    # a[g*N+i, f] = sum_j p_g[i, j] * v[j, f]; only head g's feature block of
    # row-block g is wanted -> mask it out and fold the H row blocks together
    # with static 8-aligned sublane slices (no lane-axis concatenate).
    a = jnp.dot(p, v, preferred_element_type=jnp.float32) * mask       # (H*N, F)
    attn = a[0:seq, :]
    for g in range(1, head):
        attn = attn + a[g * seq:(g + 1) * seq, :]                      # (N, F)

    # ---- fused output projection + FeatureWiseLinear head shuffle -------
    out_ref[0] = jnp.dot(attn, wo_ref[...],
                         preferred_element_type=jnp.float32) + bo_ref[...]


def _block_diag(w):
    # (H, fi, fo) -> (H*fi, H*fo) block-diagonal, built elementwise (exact).
    h, fi, fo = w.shape
    eye = jnp.eye(h, dtype=w.dtype)
    return (w[:, :, None, :] * eye[:, None, :, None]).reshape(h * fi, h * fo)


@partial(jax.jit, static_argnums=(2,))
def msa_forward(x, p, head):
    b, n, h, fh = x.shape
    assert h == head
    f = h * fh
    inv_sqrt_d = 1.0 / (f ** 0.5)        # torch divides scores by sqrt(feats)

    # ---- host-side weight packing (fused into the jitted program) ------
    wq = _block_diag(p['wq']) * inv_sqrt_d          # fold attention scale into Q
    wk = _block_diag(p['wk'])
    wv = _block_diag(p['wv'])
    bq = p['bq'].reshape(1, f) * inv_sqrt_d
    bk = p['bk'].reshape(1, f)
    bv = p['bv'].reshape(1, f)

    # FeatureWiseLinear head shuffle as an (F,F) matrix:
    #   M[h_in*FH + d, g_out*FH + d] = whs[g_out, h_in]
    eye_fh = jnp.eye(fh, dtype=x.dtype)
    m_hs = (p['whs'].T[:, None, :, None] * eye_fh[None, :, None, :]).reshape(f, f)
    # fuse o-projection with the head shuffle (dropout p=0 sits between them
    # in torch and is an identity):
    wo = jnp.dot(_block_diag(p['wo']), m_hs, precision=HI)
    bo = (jnp.dot(p['bo'].reshape(1, f), m_hs, precision=HI)
          + jnp.repeat(p['bhs'], fh)[None, :])

    # head-block selection mask for the stacked-score trick:
    # mask[g*N + i, g2*FH + d] = 1.0 iff g == g2
    mask = jnp.kron(jnp.eye(head, dtype=x.dtype), jnp.ones((n, fh), x.dtype))

    xf = x.reshape(b, n, f)      # (B, N, H, FH) -> (B, N, F), head-major features

    def full(shape):
        return pl.BlockSpec(shape, lambda i: (0,) * len(shape))

    kernel = partial(msa_kernel, head=head, seq=n)
    out = pl.pallas_call(
        kernel,
        out_shape=jax.ShapeDtypeStruct((b, n, f), jnp.float32),
        grid=(b,),
        in_specs=[
            pl.BlockSpec((1, n, f), lambda i: (i, 0, 0)),   # x
            full((f, f)), full((1, f)),                     # q (scale folded)
            full((f, f)), full((1, f)),                     # k
            full((f, f)), full((1, f)),                     # v
            full((f, f)), full((1, f)),                     # o (+ head shuffle)
            full((head * n, f)),                            # head mask
        ],
        out_specs=pl.BlockSpec((1, n, f), lambda i: (i, 0, 0)),
        compiler_params=pltpu.CompilerParams(dimension_semantics=("parallel",)),
    )(xf, wq, bq, wk, bk, wv, bv, wo, bo, mask)
    return out.reshape(b, n, h, fh)


def init_params(key, feats, head):
    fh = feats // head
    ks = jax.random.split(key, 10)

    def u(k, shape, fan_in):
        bound = 1.0 / math.sqrt(fan_in)
        return jax.random.uniform(k, shape, jnp.float32, -bound, bound)

    return dict(
        wq=u(ks[0], (head, fh, fh), fh), bq=u(ks[1], (head, fh), fh),
        wk=u(ks[2], (head, fh, fh), fh), bk=u(ks[3], (head, fh), fh),
        wv=u(ks[4], (head, fh, fh), fh), bv=u(ks[5], (head, fh), fh),
        wo=u(ks[6], (head, fh, fh), fh), bo=u(ks[7], (head, fh), fh),
        whs=u(ks[8], (head, head), head), bhs=u(ks[9], (head,), head),
    )


def reference_forward(x, p, head, feats):
    # pure-JAX mirror of the PyTorch MultiHeadSelfAttention (verification only)
    def grouped(v, w, bb):
        return jnp.einsum('...gi,gij->...gj', v, w, precision=HI) + bb

    q = jnp.swapaxes(grouped(x, p['wq'], p['bq']), 1, 2)    # (B,H,N,FH)
    k = jnp.swapaxes(grouped(x, p['wk'], p['bk']), 1, 2)
    v = jnp.swapaxes(grouped(x, p['wv'], p['bv']), 1, 2)
    score = jax.nn.softmax(
        jnp.einsum('bhif,bhjf->bhij', q, k, precision=HI) / (feats ** 0.5), axis=-1)
    attn = jnp.einsum('bhij,bhjf->bihf', score, v, precision=HI)    # (B,N,H,FH)
    o = grouped(attn, p['wo'], p['bo'])                              # dropout p=0 -> identity
    ot = jnp.swapaxes(o, 2, 3)                                       # (B,N,FH,H)
    ot = jnp.einsum('bnfh,gh->bnfg', ot, p['whs'], precision=HI) + p['bhs']
    return jnp.swapaxes(ot, 2, 3)                                    # (B,N,H,FH)


if __name__ == "__main__":
    B, N, HEAD, FEATS = 2, 8, 4, 32
    FH = FEATS // HEAD
    key = jax.random.PRNGKey(0)
    kx, kp = jax.random.split(key)
    x = jax.random.normal(kx, (B, N, HEAD, FH), jnp.float32)
    params = init_params(kp, FEATS, HEAD)

    out = msa_forward(x, params, HEAD)
    out = jax.block_until_ready(out)
    assert out.shape == (B, N, HEAD, FH)

    ref = reference_forward(x, params, HEAD, FEATS)
    err = float(jnp.max(jnp.abs(out - ref)))
    if not jnp.allclose(out, ref, atol=2e-3, rtol=2e-3):
        raise AssertionError(f"kernel/reference mismatch, max abs err = {err}")
    print("KERNEL_OK")
</pallas_src>

<mosaic_0001>
module attributes {stable_mosaic.version = 11 : i64} {
  func.func @msa_kernel(%arg0: i32, %arg1: memref<1x8x32xf32, #tpu.memory_space<vmem>>, %arg2: memref<32x32xf32, #tpu.memory_space<vmem>>, %arg3: memref<1x32xf32, #tpu.memory_space<vmem>>, %arg4: memref<32x32xf32, #tpu.memory_space<vmem>>, %arg5: memref<1x32xf32, #tpu.memory_space<vmem>>, %arg6: memref<32x32xf32, #tpu.memory_space<vmem>>, %arg7: memref<1x32xf32, #tpu.memory_space<vmem>>, %arg8: memref<32x32xf32, #tpu.memory_space<vmem>>, %arg9: memref<1x32xf32, #tpu.memory_space<vmem>>, %arg10: memref<32x32xf32, #tpu.memory_space<vmem>>, %arg11: memref<1x8x32xf32, #tpu.memory_space<vmem>>) attributes {dimension_semantics = [#tpu.dimension_semantics<parallel>], iteration_bounds = array<i64: 2>, scalar_prefetch = 0 : i64, scratch_operands = 0 : i64, tpu.core_type = #tpu.core_type<tc>, window_params = [{transform_indices = @transform_0, window_bounds = array<i64: 1, 8, 32>}, {pipeline_mode = #tpu.pipeline_mode<synchronous>, transform_indices = @transform_1, window_bounds = array<i64: 32, 32>}, {pipeline_mode = #tpu.pipeline_mode<synchronous>, transform_indices = @transform_2, window_bounds = array<i64: 1, 32>}, {pipeline_mode = #tpu.pipeline_mode<synchronous>, transform_indices = @transform_3, window_bounds = array<i64: 32, 32>}, {pipeline_mode = #tpu.pipeline_mode<synchronous>, transform_indices = @transform_4, window_bounds = array<i64: 1, 32>}, {pipeline_mode = #tpu.pipeline_mode<synchronous>, transform_indices = @transform_5, window_bounds = array<i64: 32, 32>}, {pipeline_mode = #tpu.pipeline_mode<synchronous>, transform_indices = @transform_6, window_bounds = array<i64: 1, 32>}, {pipeline_mode = #tpu.pipeline_mode<synchronous>, transform_indices = @transform_7, window_bounds = array<i64: 32, 32>}, {pipeline_mode = #tpu.pipeline_mode<synchronous>, transform_indices = @transform_8, window_bounds = array<i64: 1, 32>}, {pipeline_mode = #tpu.pipeline_mode<synchronous>, transform_indices = @transform_9, window_bounds = array<i64: 32, 32>}, {transform_indices = @transform_10, window_bounds = array<i64: 1, 8, 32>}]} {
    %c0 = arith.constant 0 : index
    %c0_0 = arith.constant 0 : index
    %c0_1 = arith.constant 0 : index
    %0 = vector.load %arg1[%c0, %c0_0, %c0_1] : memref<1x8x32xf32, #tpu.memory_space<vmem>>, vector<1x8x32xf32>
    %1 = vector.shape_cast %0 : vector<1x8x32xf32> to vector<8x32xf32>
    %c0_2 = arith.constant 0 : index
    %c0_3 = arith.constant 0 : index
    %2 = vector.load %arg2[%c0_2, %c0_3] : memref<32x32xf32, #tpu.memory_space<vmem>>, vector<32x32xf32>
    %cst = arith.constant dense<0.000000e+00> : vector<8x32xf32>
    %3 = tpu.matmul %1, %2, %cst {dimension_numbers = #tpu.dot_dimension_numbers<[1], [0], [0], [1], [0, 0, 1, 1], [], []>} : vector<8x32xf32>, vector<32x32xf32>, vector<8x32xf32> -> vector<8x32xf32>
    %c0_4 = arith.constant 0 : index
    %c0_5 = arith.constant 0 : index
    %4 = vector.load %arg3[%c0_4, %c0_5] : memref<1x32xf32, #tpu.memory_space<vmem>>, vector<1x32xf32>
    %5 = vector.broadcast %4 : vector<1x32xf32> to vector<8x32xf32>
    %6 = arith.addf %3, %5 : vector<8x32xf32>
    %c0_6 = arith.constant 0 : index
    %c0_7 = arith.constant 0 : index
    %7 = vector.load %arg4[%c0_6, %c0_7] : memref<32x32xf32, #tpu.memory_space<vmem>>, vector<32x32xf32>
    %cst_8 = arith.constant dense<0.000000e+00> : vector<8x32xf32>
    %8 = tpu.matmul %1, %7, %cst_8 {dimension_numbers = #tpu.dot_dimension_numbers<[1], [0], [0], [1], [0, 0, 1, 1], [], []>} : vector<8x32xf32>, vector<32x32xf32>, vector<8x32xf32> -> vector<8x32xf32>
    %c0_9 = arith.constant 0 : index
    %c0_10 = arith.constant 0 : index
    %9 = vector.load %arg5[%c0_9, %c0_10] : memref<1x32xf32, #tpu.memory_space<vmem>>, vector<1x32xf32>
    %10 = vector.broadcast %9 : vector<1x32xf32> to vector<8x32xf32>
    %11 = arith.addf %8, %10 : vector<8x32xf32>
    %c0_11 = arith.constant 0 : index
    %c0_12 = arith.constant 0 : index
    %12 = vector.load %arg6[%c0_11, %c0_12] : memref<32x32xf32, #tpu.memory_space<vmem>>, vector<32x32xf32>
    %cst_13 = arith.constant dense<0.000000e+00> : vector<8x32xf32>
    %13 = tpu.matmul %1, %12, %cst_13 {dimension_numbers = #tpu.dot_dimension_numbers<[1], [0], [0], [1], [0, 0, 1, 1], [], []>} : vector<8x32xf32>, vector<32x32xf32>, vector<8x32xf32> -> vector<8x32xf32>
    %c0_14 = arith.constant 0 : index
    %c0_15 = arith.constant 0 : index
    %14 = vector.load %arg7[%c0_14, %c0_15] : memref<1x32xf32, #tpu.memory_space<vmem>>, vector<1x32xf32>
    %15 = vector.broadcast %14 : vector<1x32xf32> to vector<8x32xf32>
    %16 = arith.addf %13, %15 : vector<8x32xf32>
    %c0_16 = arith.constant 0 : index
    %c0_17 = arith.constant 0 : index
    %17 = vector.load %arg10[%c0_16, %c0_17] : memref<32x32xf32, #tpu.memory_space<vmem>>, vector<32x32xf32>
    %18 = tpu.concatenate %6, %6, %6, %6 in 0 : vector<8x32xf32>, vector<8x32xf32>, vector<8x32xf32>, vector<8x32xf32> -> vector<32x32xf32>
    %19 = arith.mulf %18, %17 : vector<32x32xf32>
    %cst_18 = arith.constant dense<0.000000e+00> : vector<32x8xf32>
    %20 = tpu.matmul %19, %11, %cst_18 {dimension_numbers = #tpu.dot_dimension_numbers<[1], [1], [0], [0], [0, 0, 1, 0], [], []>} : vector<32x32xf32>, vector<8x32xf32>, vector<32x8xf32> -> vector<32x8xf32>
    %cst_19 = arith.constant dense<0xFF800000> : vector<32xf32>
    %21 = vector.multi_reduction <maximumf>, %20, %cst_19 [1] : vector<32x8xf32> to vector<32xf32>
    %22 = vector.shape_cast %21 : vector<32xf32> to vector<32x1xf32>
    %23 = vector.broadcast %22 : vector<32x1xf32> to vector<32x8xf32>
    %24 = arith.subf %20, %23 : vector<32x8xf32>
    %25 = math.exp %24 : vector<32x8xf32>
    %cst_20 = arith.constant dense<0.000000e+00> : vector<32xf32>
    %26 = vector.multi_reduction <add>, %25, %cst_20 [1] : vector<32x8xf32> to vector<32xf32>
    %27 = vector.shape_cast %26 : vector<32xf32> to vector<32x1xf32>
    %28 = tpu.reciprocal %27 {approx = true} : vector<32x1xf32> -> vector<32x1xf32>
    %29 = vector.broadcast %28 : vector<32x1xf32> to vector<32x8xf32>
    %30 = arith.mulf %25, %29 : vector<32x8xf32>
    %cst_21 = arith.constant dense<0.000000e+00> : vector<32x32xf32>
    %31 = tpu.matmul %30, %16, %cst_21 {dimension_numbers = #tpu.dot_dimension_numbers<[1], [0], [0], [1], [0, 0, 1, 1], [], []>} : vector<32x8xf32>, vector<8x32xf32>, vector<32x32xf32> -> vector<32x32xf32>
    %32 = arith.mulf %31, %17 : vector<32x32xf32>
    %33 = vector.extract_strided_slice %32 {offsets = [0, 0], sizes = [8, 32], strides = [1, 1]} : vector<32x32xf32> to vector<8x32xf32>
    %34 = vector.extract_strided_slice %32 {offsets = [8, 0], sizes = [8, 32], strides = [1, 1]} : vector<32x32xf32> to vector<8x32xf32>
    %35 = arith.addf %33, %34 : vector<8x32xf32>
    %36 = vector.extract_strided_slice %32 {offsets = [16, 0], sizes = [8, 32], strides = [1, 1]} : vector<32x32xf32> to vector<8x32xf32>
    %37 = arith.addf %35, %36 : vector<8x32xf32>
    %38 = vector.extract_strided_slice %32 {offsets = [24, 0], sizes = [8, 32], strides = [1, 1]} : vector<32x32xf32> to vector<8x32xf32>
    %39 = arith.addf %37, %38 : vector<8x32xf32>
    %c0_22 = arith.constant 0 : index
    %c0_23 = arith.constant 0 : index
    %40 = vector.load %arg8[%c0_22, %c0_23] : memref<32x32xf32, #tpu.memory_space<vmem>>, vector<32x32xf32>
    %cst_24 = arith.constant dense<0.000000e+00> : vector<8x32xf32>
    %41 = tpu.matmul %39, %40, %cst_24 {dimension_numbers = #tpu.dot_dimension_numbers<[1], [0], [0], [1], [0, 0, 1, 1], [], []>} : vector<8x32xf32>, vector<32x32xf32>, vector<8x32xf32> -> vector<8x32xf32>
    %c0_25 = arith.constant 0 : index
    %c0_26 = arith.constant 0 : index
    %42 = vector.load %arg9[%c0_25, %c0_26] : memref<1x32xf32, #tpu.memory_space<vmem>>, vector<1x32xf32>
    %43 = vector.broadcast %42 : vector<1x32xf32> to vector<8x32xf32>
    %44 = arith.addf %41, %43 : vector<8x32xf32>
    %c0_27 = arith.constant 0 : index
    %c0_28 = arith.constant 0 : index
    %c0_29 = arith.constant 0 : index
    %45 = vector.load %arg11[%c0_27, %c0_28, %c0_29] : memref<1x8x32xf32, #tpu.memory_space<vmem>>, vector<1x8x32xf32>
    %46 = vector.shape_cast %45 : vector<1x8x32xf32> to vector<8x32xf32>
    %47 = vector.shape_cast %44 : vector<8x32xf32> to vector<1x8x32xf32>
    tpu.vector_store %arg11[%c0_27, %c0_28, %c0_29], %47 {strides = array<i32>} : memref<1x8x32xf32, #tpu.memory_space<vmem>>, vector<1x8x32xf32>,
    return
  }
  func.func @transform_0(%arg0: i32) -> (i32, i32, i32) {
    %c0_i32 = arith.constant 0 : i32
    %c0_i32_0 = arith.constant 0 : i32
    %c0_i32_1 = arith.constant 0 : i32
    return %arg0, %c0_i32, %c0_i32_0 : i32, i32, i32
  }
  func.func @transform_1(%arg0: i32) -> (i32, i32) {
    %c0_i32 = arith.constant 0 : i32
    %c0_i32_0 = arith.constant 0 : i32
    %c0_i32_1 = arith.constant 0 : i32
    return %c0_i32, %c0_i32_0 : i32, i32
  }
  func.func @transform_2(%arg0: i32) -> (i32, i32) {
    %c0_i32 = arith.constant 0 : i32
    %c0_i32_0 = arith.constant 0 : i32
    %c0_i32_1 = arith.constant 0 : i32
    return %c0_i32, %c0_i32_0 : i32, i32
  }
  func.func @transform_3(%arg0: i32) -> (i32, i32) {
    %c0_i32 = arith.constant 0 : i32
    %c0_i32_0 = arith.constant 0 : i32
    %c0_i32_1 = arith.constant 0 : i32
    return %c0_i32, %c0_i32_0 : i32, i32
  }
  func.func @transform_4(%arg0: i32) -> (i32, i32) {
    %c0_i32 = arith.constant 0 : i32
    %c0_i32_0 = arith.constant 0 : i32
    %c0_i32_1 = arith.constant 0 : i32
    return %c0_i32, %c0_i32_0 : i32, i32
  }
  func.func @transform_5(%arg0: i32) -> (i32, i32) {
    %c0_i32 = arith.constant 0 : i32
    %c0_i32_0 = arith.constant 0 : i32
    %c0_i32_1 = arith.constant 0 : i32
    return %c0_i32, %c0_i32_0 : i32, i32
  }
  func.func @transform_6(%arg0: i32) -> (i32, i32) {
    %c0_i32 = arith.constant 0 : i32
    %c0_i32_0 = arith.constant 0 : i32
    %c0_i32_1 = arith.constant 0 : i32
    return %c0_i32, %c0_i32_0 : i32, i32
  }
  func.func @transform_7(%arg0: i32) -> (i32, i32) {
    %c0_i32 = arith.constant 0 : i32
    %c0_i32_0 = arith.constant 0 : i32
    %c0_i32_1 = arith.constant 0 : i32
    return %c0_i32, %c0_i32_0 : i32, i32
  }
  func.func @transform_8(%arg0: i32) -> (i32, i32) {
    %c0_i32 = arith.constant 0 : i32
    %c0_i32_0 = arith.constant 0 : i32
    %c0_i32_1 = arith.constant 0 : i32
    return %c0_i32, %c0_i32_0 : i32, i32
  }
  func.func @transform_9(%arg0: i32) -> (i32, i32) {
    %c0_i32 = arith.constant 0 : i32
    %c0_i32_0 = arith.constant 0 : i32
    %c0_i32_1 = arith.constant 0 : i32
    return %c0_i32, %c0_i32_0 : i32, i32
  }
  func.func @transform_10(%arg0: i32) -> (i32, i32, i32) {
    %c0_i32 = arith.constant 0 : i32
    %c0_i32_0 = arith.constant 0 : i32
    %c0_i32_1 = arith.constant 0 : i32
    return %arg0, %c0_i32, %c0_i32_0 : i32, i32, i32
  }
}

</mosaic_0001>

<llo_original>
// kernel: msa_forward.1
$region0: #{msa_forward.1}
  #allocation0 [shape = 'u32[]', space=smem, size = 0x4, offset = 0x4, fixed_abs, tag = 'smem constant byte address 0x4 - core index']
  #allocation1 [shape = 'u32[72,128]{1,0:T(1,128)}', space=vmem, size = 0x9000, scoped, tag = 'internal scratch']
  %s0 = inlined_call_operand.vmem [shape: f32[2,8,32], index: 0, kind: input, shape index: {}]
  %s1 = inlined_call_operand.vmem [shape: f32[32,32], index: 1, kind: input, shape index: {}]
  %s2 = inlined_call_operand.vmem [shape: f32[1,32], index: 2, kind: input, shape index: {}]
  %s3 = inlined_call_operand.vmem [shape: f32[32,32], index: 3, kind: input, shape index: {}]
  %s4 = inlined_call_operand.vmem [shape: f32[1,32], index: 4, kind: input, shape index: {}]
  %s5 = inlined_call_operand.vmem [shape: f32[32,32], index: 5, kind: input, shape index: {}]
  %s6 = inlined_call_operand.vmem [shape: f32[1,32], index: 6, kind: input, shape index: {}]
  %s7 = inlined_call_operand.vmem [shape: f32[32,32], index: 7, kind: input, shape index: {}]
  %s8 = inlined_call_operand.vmem [shape: f32[1,32], index: 8, kind: input, shape index: {}]
  %s9 = inlined_call_operand.vmem [shape: f32[32,32], index: 9, kind: input, shape index: {}]
  %s10 = inlined_call_operand.vmem [shape: f32[2,8,32], index: 10, kind: output, shape index: {}]
  %s11 = sld [smem:[#allocation0]]
  $region73: #{msa_forward.1} parent=0
    _
  %s13 = ssub.s32 1, %s11
  %s14 = scalar_select 0, %s13, %s11
  loop: start=0, step=1, limit=4
  $region2: #{msa_forward.1} parent=0 // loop_pre_header
    _
  $region3: #{msa_forward.1} parent=0 // loop_header
    %s16 = sphi 0, %s20
    %p17 = scmp.ge.s32.totalorder %s16, 4
    %s26 = sphi 0, %s28
    %s29 = sphi 0, %s26
    %s30 = sphi 0, %s29
    %s46 = sphi 0, %s30
    %s50 = sphi 0, %s50
    %s52 = sphi 0, %s50
    %s53 = sphi 0, %s52
    %s67 = sphi 0, %s53
    %s71 = sphi 0, %s71
    %s73 = sphi 0, %s71
    %s74 = sphi 0, %s73
    %s88 = sphi 0, %s74
    %s92 = sphi 0, %s92
    %s94 = sphi 0, %s92
    %s95 = sphi 0, %s94
    %s109 = sphi 0, %s95
    %s113 = sphi 0, %s113
    %s115 = sphi 0, %s113
    %s116 = sphi 0, %s115
    %s130 = sphi 0, %s116
    %s134 = sphi 0, %s134
    %s136 = sphi 0, %s134
    %s137 = sphi 0, %s136
    %s151 = sphi 0, %s137
    %s155 = sphi 0, %s155
    %s157 = sphi 0, %s155
    %s158 = sphi 0, %s157
    %s172 = sphi 0, %s158
    %s176 = sphi 0, %s176
    %s178 = sphi 0, %s176
    %s179 = sphi 0, %s178
    %s193 = sphi 0, %s179
    %s197 = sphi 0, %s197
    %s199 = sphi 0, %s197
    %s200 = sphi 0, %s199
    %s214 = sphi 0, %s200
    %s218 = sphi 0, %s218
    %s220 = sphi 0, %s218
    %s221 = sphi 0, %s220
    %s235 = sphi 0, %s221
    %s241 = sphi 0, %s243
    %s244 = sphi 0, %s241
    %s245 = sphi 0, %s244
    %s261 = sphi 0, %s245
  $region4: #{msa_forward.1} parent=0 // loop_header_branch
    %19 = sbr.rel (%p17) target = $region8
  $region5: #{msa_forward.1} parent=0 // loop_body
    %s21 = ssub.s32 %s16, 1
    %s22 = ssub.s32 %s16, 2
    %s23 = sadd.s32 %s16, 1
    %s24 = ssub.s32 %s16, %s23
    %p25 = scmp.eq.s32.totalorder %s24, 0
    %s27 = sadd.s32 %s26, 1
    %s28 = scalar_select %p25, %s26, %s27
    %p31 = pneg %p25
    %p32 = scmp.eq.s32.totalorder %s16, 1
    %p33 = por %p31, %p32
    %p34 = scmp.ne.s32.totalorder %s26, %s29
    %p35 = scmp.eq.s32.totalorder %s16, 0
    %p36 = por %p34, %p35
    %p37 = scmp.ne.s32.totalorder %s26, %s29
    %p38 = scmp.eq.s32.totalorder %s21, 1
    %p39 = por %p37, %p38
    %p40 = scmp.ne.s32.totalorder %s29, %s30
    %p41 = scmp.eq.s32.totalorder %s21, 0
    %p42 = por %p40, %p41
    %p43 = scmp.ne.s32.totalorder %s29, %s30
    %p44 = scmp.eq.s32.totalorder %s22, 1
    %p45 = por %p43, %p44
    %p47 = scmp.ne.s32.totalorder %s30, %s46
    %p48 = scmp.eq.s32.totalorder %s22, 0
    %p49 = por %p47, %p48
    %s51 = sadd.s32 %s50, 1
    %p54 = scmp.eq.s32.totalorder %s16, 1
    %p55 = scmp.ne.s32.totalorder %s50, %s52
    %p56 = scmp.eq.s32.totalorder %s16, 0
    %p57 = por %p55, %p56
    %p58 = scmp.ne.s32.totalorder %s50, %s52
    %p59 = scmp.eq.s32.totalorder %s21, 1
    %p60 = por %p58, %p59
    %p61 = scmp.ne.s32.totalorder %s52, %s53
    %p62 = scmp.eq.s32.totalorder %s21, 0
    %p63 = por %p61, %p62
    %p64 = scmp.ne.s32.totalorder %s52, %s53
    %p65 = scmp.eq.s32.totalorder %s22, 1
    %p66 = por %p64, %p65
    %p68 = scmp.ne.s32.totalorder %s53, %s67
    %p69 = scmp.eq.s32.totalorder %s22, 0
    %p70 = por %p68, %p69
    %s72 = sadd.s32 %s71, 1
    %p75 = scmp.eq.s32.totalorder %s16, 1
    %p76 = scmp.ne.s32.totalorder %s71, %s73
    %p77 = scmp.eq.s32.totalorder %s16, 0
    %p78 = por %p76, %p77
    %p79 = scmp.ne.s32.totalorder %s71, %s73
    %p80 = scmp.eq.s32.totalorder %s21, 1
    %p81 = por %p79, %p80
    %p82 = scmp.ne.s32.totalorder %s73, %s74
    %p83 = scmp.eq.s32.totalorder %s21, 0
    %p84 = por %p82, %p83
    %p85 = scmp.ne.s32.totalorder %s73, %s74
    %p86 = scmp.eq.s32.totalorder %s22, 1
    %p87 = por %p85, %p86
    %p89 = scmp.ne.s32.totalorder %s74, %s88
    %p90 = scmp.eq.s32.totalorder %s22, 0
    %p91 = por %p89, %p90
    %s93 = sadd.s32 %s92, 1
    %p96 = scmp.eq.s32.totalorder %s16, 1
    %p97 = scmp.ne.s32.totalorder %s92, %s94
    %p98 = scmp.eq.s32.totalorder %s16, 0
    %p99 = por %p97, %p98
    %p100 = scmp.ne.s32.totalorder %s92, %s94
    %p101 = scmp.eq.s32.totalorder %s21, 1
    %p102 = por %p100, %p101
    %p103 = scmp.ne.s32.totalorder %s94, %s95
    %p104 = scmp.eq.s32.totalorder %s21, 0
    %p105 = por %p103, %p104
    %p106 = scmp.ne.s32.totalorder %s94, %s95
    %p107 = scmp.eq.s32.totalorder %s22, 1
    %p108 = por %p106, %p107
    %p110 = scmp.ne.s32.totalorder %s95, %s109
    %p111 = scmp.eq.s32.totalorder %s22, 0
    %p112 = por %p110, %p111
    %s114 = sadd.s32 %s113, 1
    %p117 = scmp.eq.s32.totalorder %s16, 1
    %p118 = scmp.ne.s32.totalorder %s113, %s115
    %p119 = scmp.eq.s32.totalorder %s16, 0
    %p120 = por %p118, %p119
    %p121 = scmp.ne.s32.totalorder %s113, %s115
    %p122 = scmp.eq.s32.totalorder %s21, 1
    %p123 = por %p121, %p122
    %p124 = scmp.ne.s32.totalorder %s115, %s116
    %p125 = scmp.eq.s32.totalorder %s21, 0
    %p126 = por %p124, %p125
    %p127 = scmp.ne.s32.totalorder %s115, %s116
    %p128 = scmp.eq.s32.totalorder %s22, 1
    %p129 = por %p127, %p128
    %p131 = scmp.ne.s32.totalorder %s116, %s130
    %p132 = scmp.eq.s32.totalorder %s22, 0
    %p133 = por %p131, %p132
    %s135 = sadd.s32 %s134, 1
    %p138 = scmp.eq.s32.totalorder %s16, 1
    %p139 = scmp.ne.s32.totalorder %s134, %s136
    %p140 = scmp.eq.s32.totalorder %s16, 0
    %p141 = por %p139, %p140
    %p142 = scmp.ne.s32.totalorder %s134, %s136
    %p143 = scmp.eq.s32.totalorder %s21, 1
    %p144 = por %p142, %p143
    %p145 = scmp.ne.s32.totalorder %s136, %s137
    %p146 = scmp.eq.s32.totalorder %s21, 0
    %p147 = por %p145, %p146
    %p148 = scmp.ne.s32.totalorder %s136, %s137
    %p149 = scmp.eq.s32.totalorder %s22, 1
    %p150 = por %p148, %p149
    %p152 = scmp.ne.s32.totalorder %s137, %s151
    %p153 = scmp.eq.s32.totalorder %s22, 0
    %p154 = por %p152, %p153
    %s156 = sadd.s32 %s155, 1
    %p159 = scmp.eq.s32.totalorder %s16, 1
    %p160 = scmp.ne.s32.totalorder %s155, %s157
    %p161 = scmp.eq.s32.totalorder %s16, 0
    %p162 = por %p160, %p161
    %p163 = scmp.ne.s32.totalorder %s155, %s157
    %p164 = scmp.eq.s32.totalorder %s21, 1
    %p165 = por %p163, %p164
    %p166 = scmp.ne.s32.totalorder %s157, %s158
    %p167 = scmp.eq.s32.totalorder %s21, 0
    %p168 = por %p166, %p167
    %p169 = scmp.ne.s32.totalorder %s157, %s158
    %p170 = scmp.eq.s32.totalorder %s22, 1
    %p171 = por %p169, %p170
    %p173 = scmp.ne.s32.totalorder %s158, %s172
    %p174 = scmp.eq.s32.totalorder %s22, 0
    %p175 = por %p173, %p174
    %s177 = sadd.s32 %s176, 1
    %p180 = scmp.eq.s32.totalorder %s16, 1
    %p181 = scmp.ne.s32.totalorder %s176, %s178
    %p182 = scmp.eq.s32.totalorder %s16, 0
    %p183 = por %p181, %p182
    %p184 = scmp.ne.s32.totalorder %s176, %s178
    %p185 = scmp.eq.s32.totalorder %s21, 1
    %p186 = por %p184, %p185
    %p187 = scmp.ne.s32.totalorder %s178, %s179
    %p188 = scmp.eq.s32.totalorder %s21, 0
    %p189 = por %p187, %p188
    %p190 = scmp.ne.s32.totalorder %s178, %s179
    %p191 = scmp.eq.s32.totalorder %s22, 1
    %p192 = por %p190, %p191
    %p194 = scmp.ne.s32.totalorder %s179, %s193
    %p195 = scmp.eq.s32.totalorder %s22, 0
    %p196 = por %p194, %p195
    %s198 = sadd.s32 %s197, 1
    %p201 = scmp.eq.s32.totalorder %s16, 1
    %p202 = scmp.ne.s32.totalorder %s197, %s199
    %p203 = scmp.eq.s32.totalorder %s16, 0
    %p204 = por %p202, %p203
    %p205 = scmp.ne.s32.totalorder %s197, %s199
    %p206 = scmp.eq.s32.totalorder %s21, 1
    %p207 = por %p205, %p206
    %p208 = scmp.ne.s32.totalorder %s199, %s200
    %p209 = scmp.eq.s32.totalorder %s21, 0
    %p210 = por %p208, %p209
    %p211 = scmp.ne.s32.totalorder %s199, %s200
    %p212 = scmp.eq.s32.totalorder %s22, 1
    %p213 = por %p211, %p212
    %p215 = scmp.ne.s32.totalorder %s200, %s214
    %p216 = scmp.eq.s32.totalorder %s22, 0
    %p217 = por %p215, %p216
    %s219 = sadd.s32 %s218, 1
    %p222 = scmp.eq.s32.totalorder %s16, 1
    %p223 = scmp.ne.s32.totalorder %s218, %s220
    %p224 = scmp.eq.s32.totalorder %s16, 0
    %p225 = por %p223, %p224
    %p226 = scmp.ne.s32.totalorder %s218, %s220
    %p227 = scmp.eq.s32.totalorder %s21, 1
    %p228 = por %p226, %p227
    %p229 = scmp.ne.s32.totalorder %s220, %s221
    %p230 = scmp.eq.s32.totalorder %s21, 0
    %p231 = por %p229, %p230
    %p232 = scmp.ne.s32.totalorder %s220, %s221
    %p233 = scmp.eq.s32.totalorder %s22, 1
    %p234 = por %p232, %p233
    %p236 = scmp.ne.s32.totalorder %s221, %s235
    %p237 = scmp.eq.s32.totalorder %s22, 0
    %p238 = por %p236, %p237
    %s239 = ssub.s32 %s16, %s23
    %p240 = scmp.eq.s32.totalorder %s239, 0
    %s242 = sadd.s32 %s241, 1
    %s243 = scalar_select %p240, %s241, %s242
    %p246 = pneg %p240
    %p247 = scmp.eq.s32.totalorder %s16, 1
    %p248 = por %p246, %p247
    %p249 = scmp.ne.s32.totalorder %s241, %s244
    %p250 = scmp.eq.s32.totalorder %s16, 0
    %p251 = por %p249, %p250
    %p252 = scmp.ne.s32.totalorder %s241, %s244
    %p253 = scmp.eq.s32.totalorder %s21, 1
    %p254 = por %p252, %p253
    %p255 = scmp.ne.s32.totalorder %s244, %s245
    %p256 = scmp.eq.s32.totalorder %s21, 0
    %p257 = por %p255, %p256
    %p258 = scmp.ne.s32.totalorder %s244, %s245
    %p259 = scmp.eq.s32.totalorder %s22, 1
    %p260 = por %p258, %p259
    %p262 = scmp.ne.s32.totalorder %s245, %s261
    %p263 = scmp.eq.s32.totalorder %s22, 0
    %p264 = por %p262, %p263
    %p265 = scmp.le.s32.totalorder 1, %s16
    %p266 = scmp.lt.s32.totalorder %s16, 3
    %p267 = pnand %p265, %p266
    %p268 = pneg %p267
    // Predicated region
    $region9: #{msa_forward.1} parent=5 // pred_check
      _
    $region10: #{msa_forward.1} parent=5 // pred_check_branch
      %270 = sbr.rel (%p267) target = $region12
    $region11: #{msa_forward.1} parent=5 // pred_region
      %s271 = ssub.s32 %s16, 1
      // Predicated region
      $region13: #{msa_forward.1} parent=11 // pred_check
        %p272 = pneg %p63
      $region14: #{msa_forward.1} parent=11 // pred_check_branch
        %274 = sbr.rel (%p272) target = $region16
      $region15: #{msa_forward.1} parent=11 // pred_region
        _
      $region16: #{msa_forward.1} parent=11 // pred_fallthru
        _
      // Predicated region
      $region17: #{msa_forward.1} parent=11 // pred_check
        %p275 = pneg %p84
      $region18: #{msa_forward.1} parent=11 // pred_check_branch
        %277 = sbr.rel (%p275) target = $region20
      $region19: #{msa_forward.1} parent=11 // pred_region
        _
      $region20: #{msa_forward.1} parent=11 // pred_fallthru
        _
      // Predicated region
      $region21: #{msa_forward.1} parent=11 // pred_check
        %p278 = pneg %p105
      $region22: #{msa_forward.1} parent=11 // pred_check_branch
        %280 = sbr.rel (%p278) target = $region24
      $region23: #{msa_forward.1} parent=11 // pred_region
        _
      $region24: #{msa_forward.1} parent=11 // pred_fallthru
        _
      // Predicated region
      $region25: #{msa_forward.1} parent=11 // pred_check
        %p281 = pneg %p126
      $region26: #{msa_forward.1} parent=11 // pred_check_branch
        %283 = sbr.rel (%p281) target = $region28
      $region27: #{msa_forward.1} parent=11 // pred_region
        _
      $region28: #{msa_forward.1} parent=11 // pred_fallthru
        _
      // Predicated region
      $region29: #{msa_forward.1} parent=11 // pred_check
        %p284 = pneg %p147
      $region30: #{msa_forward.1} parent=11 // pred_check_branch
        %286 = sbr.rel (%p284) target = $region32
      $region31: #{msa_forward.1} parent=11 // pred_region
        _
      $region32: #{msa_forward.1} parent=11 // pred_fallthru
        _
      // Predicated region
      $region33: #{msa_forward.1} parent=11 // pred_check
        %p287 = pneg %p168
      $region34: #{msa_forward.1} parent=11 // pred_check_branch
        %289 = sbr.rel (%p287) target = $region36
      $region35: #{msa_forward.1} parent=11 // pred_region
        _
      $region36: #{msa_forward.1} parent=11 // pred_fallthru
        _
      // Predicated region
      $region37: #{msa_forward.1} parent=11 // pred_check
        %p290 = pneg %p189
      $region38: #{msa_forward.1} parent=11 // pred_check_branch
        %292 = sbr.rel (%p290) target = $region40
      $region39: #{msa_forward.1} parent=11 // pred_region
        _
      $region40: #{msa_forward.1} parent=11 // pred_fallthru
        _
      // Predicated region
      $region41: #{msa_forward.1} parent=11 // pred_check
        %p293 = pneg %p210
      $region42: #{msa_forward.1} parent=11 // pred_check_branch
        %295 = sbr.rel (%p293) target = $region44
      $region43: #{msa_forward.1} parent=11 // pred_region
        _
      $region44: #{msa_forward.1} parent=11 // pred_fallthru
        _
      // Predicated region
      $region45: #{msa_forward.1} parent=11 // pred_check
        %p296 = pneg %p231
      $region46: #{msa_forward.1} parent=11 // pred_check_branch
        %298 = sbr.rel (%p296) target = $region48
      $region47: #{msa_forward.1} parent=11 // pred_region
        _
      $region48: #{msa_forward.1} parent=11 // pred_fallthru
        _
    $region12: #{msa_forward.1} parent=5 // pred_fallthru
      _
    %p299 = scmp.lt.s32.totalorder %s16, 2
    // Predicated region
    $region49: #{msa_forward.1} parent=5 // pred_check
      %p300 = pneg %p299
    $region50: #{msa_forward.1} parent=5 // pred_check_branch
      %302 = sbr.rel (%p300) target = $region52
    $region51: #{msa_forward.1} parent=5 // pred_region
      // Predicated region
      $region53: #{msa_forward.1} parent=51 // pred_check
        %p303 = pneg %p36
      $region54: #{msa_forward.1} parent=51 // pred_check_branch
        %305 = sbr.rel (%p303) target = $region56
      $region55: #{msa_forward.1} parent=51 // pred_region
        %p306 = scmp.lt.s32.totalorder %s16, 1
        %s307 = scalar_select %p306, %s16, 1
        %s308 = smul.addr %s307, 8
        %s309 = scalar_lea.vmem %s0, %s308
      $region56: #{msa_forward.1} parent=51 // pred_fallthru
        _
    $region52: #{msa_forward.1} parent=5 // pred_fallthru
      _
    %p310 = scmp.le.s32.totalorder 1, %s16
    %p311 = scmp.lt.s32.totalorder %s16, 3
    %p312 = pnand %p310, %p311
    %p313 = pneg %p312
    // Predicated region
    $region57: #{msa_forward.1} parent=5 // pred_check
      _
    $region58: #{msa_forward.1} parent=5 // pred_check_branch
      %315 = sbr.rel (%p312) target = $region60
    $region59: #{msa_forward.1} parent=5 // pred_region
      %s316 = ssub.s32 %s16, 1
      %p317 = scmp.lt.s32.totalorder %s21, 1
      %s318 = scalar_select %p317, %s21, 1
      %s319 = smul.addr %s318, 8
      %s320 = scalar_lea.vmem %s0, %s319
      %p321 = pneg %p42
      %p322 = pneg %p39
      %p323 = pneg %p63
      %p324 = pneg %p60
      %p325 = pneg %p84
      %p326 = pneg %p81
      %p327 = pneg %p105
      %p328 = pneg %p102
      %p329 = pneg %p126
      %p330 = pneg %p123
      %p331 = pneg %p147
      %p332 = pneg %p144
      %p333 = pneg %p168
      %p334 = pneg %p165
      %p335 = pneg %p189
      %p336 = pneg %p186
      %p337 = pneg %p210
      %p338 = pneg %p207
      %p339 = pneg %p231
      %p340 = pneg %p228
      %p341 = pneg %p257
      %p342 = pneg %p254
      %p343 = scmp.lt.s32.totalorder %s21, 1
      %s344 = scalar_select %p343, %s21, 1
      %s345 = smul.addr %s344, 8
      %s346 = scalar_lea.vmem %s10, %s345
      %p347 = scmp.lt.s32.totalorder %s21, 1
      %s348 = scalar_select %p347, %s21, 1
      %s349 = smul.addr %s348, 8
      %s350 = scalar_lea.vmem %s0, %s349
      %p351 = scmp.lt.s32.totalorder %s21, 1
      %s352 = scalar_select %p351, %s21, 1
      %s353 = smul.addr %s352, 8
      %s354 = scalar_lea.vmem %s10, %s353
      %v355 = vld [vmem:[%s350] sm:$0xff]
      %v356 = vld [vmem:[%s1] sm:$0xff]
      %v357 = vld [vmem:[%s1 + $0x8] sm:$0xff]
      %v358 = vld [vmem:[%s1 + $0x10] sm:$0xff]
      %v359 = vld [vmem:[%s1 + $0x18] sm:$0xff]
      %v360 = vld [vmem:[%s2] sm:$0x1]
      %v362 = vperm.slane %v360, 0
      %vm364 = vcmask 261120
      %v366 = vsel %vm364, %v355, 0
      %368 = vmatpush.msra.mxu0 0.0
      %369 = vmatpush.msra.mxu0 0.0
      %370 = vmatpush.msra.mxu0 0.0
      %371 = vmatpush.msra.mxu0 0.0
      %372 = vmatpush.msra.mxu0 0.0
      %373 = vmatpush.msra.mxu0 0.0
      %374 = vmatpush.msra.mxu0 0.0
      %375 = vmatpush.msra.mxu0 0.0
      %376 = vmatpush.msra.mxu0 0.0
      %377 = vmatpush.msra.mxu0 0.0
      %378 = vmatpush.msra.mxu0 0.0
      %379 = vmatpush.msra.mxu0 0.0
      %380 = vmatpush.msra.mxu0 %v359
      %381 = vmatpush.msra.mxu0 %v358
      %382 = vmatpush.msra.mxu0 %v357
      %383 = vmatpush.msra.mxu0 %v356
      %384 = vmatmul.f32.gmra.mxu0 %v366
      %v385 = vpop.f32.mrf.mxu0
      %v386 = vadd.f32 %v362, %v385
      %387 = vdwg.mxu0
      %v388 = vld [vmem:[%s3] sm:$0xff]
      %v389 = vld [vmem:[%s3 + $0x8] sm:$0xff]
      %v390 = vld [vmem:[%s3 + $0x10] sm:$0xff]
      %v391 = vld [vmem:[%s3 + $0x18] sm:$0xff]
      %v392 = vld [vmem:[%s4] sm:$0x1]
      %v394 = vperm.slane %v392, 0
      %396 = vmatpush.msra.mxu0 0.0
      %397 = vmatpush.msra.mxu0 0.0
      %398 = vmatpush.msra.mxu0 0.0
      %399 = vmatpush.msra.mxu0 0.0
      %400 = vmatpush.msra.mxu0 0.0
      %401 = vmatpush.msra.mxu0 0.0
      %402 = vmatpush.msra.mxu0 0.0
      %403 = vmatpush.msra.mxu0 0.0
      %404 = vmatpush.msra.mxu0 0.0
      %405 = vmatpush.msra.mxu0 0.0
      %406 = vmatpush.msra.mxu0 0.0
      %407 = vmatpush.msra.mxu0 0.0
      %408 = vmatpush.msra.mxu0 %v391
      %409 = vmatpush.msra.mxu0 %v390
      %410 = vmatpush.msra.mxu0 %v389
      %411 = vmatpush.msra.mxu0 %v388
      %412 = vmatmul.f32.gmra.mxu0 %v366
      %v413 = vpop.f32.mrf.mxu0
      %v414 = vadd.f32 %v394, %v413
      %415 = vdwg.mxu0
      %v416 = vld [vmem:[%s5] sm:$0xff]
      %v417 = vld [vmem:[%s5 + $0x8] sm:$0xff]
      %v418 = vld [vmem:[%s5 + $0x10] sm:$0xff]
      %v419 = vld [vmem:[%s5 + $0x18] sm:$0xff]
      %v420 = vld [vmem:[%s6] sm:$0x1]
      %v422 = vperm.slane %v420, 0
      %424 = vmatpush.msra.mxu0 0.0
      %425 = vmatpush.msra.mxu0 0.0
      %426 = vmatpush.msra.mxu0 0.0
      %427 = vmatpush.msra.mxu0 0.0
      %428 = vmatpush.msra.mxu0 0.0
      %429 = vmatpush.msra.mxu0 0.0
      %430 = vmatpush.msra.mxu0 0.0
      %431 = vmatpush.msra.mxu0 0.0
      %432 = vmatpush.msra.mxu0 0.0
      %433 = vmatpush.msra.mxu0 0.0
      %434 = vmatpush.msra.mxu0 0.0
      %435 = vmatpush.msra.mxu0 0.0
      %436 = vmatpush.msra.mxu0 %v419
      %437 = vmatpush.msra.mxu0 %v418
      %438 = vmatpush.msra.mxu0 %v417
      %439 = vmatpush.msra.mxu0 %v416
      %440 = vmatmul.f32.gmra.mxu0 %v366
      %v441 = vpop.f32.mrf.mxu0
      %v442 = vadd.f32 %v422, %v441
      %443 = vdwg.mxu0
      %v444 = vld [vmem:[%s9] sm:$0xff]
      %v445 = vld [vmem:[%s9 + $0x8] sm:$0xff]
      %v446 = vld [vmem:[%s9 + $0x10] sm:$0xff]
      %v447 = vld [vmem:[%s9 + $0x18] sm:$0xff]
      %v448 = vmul.f32 %v386, %v444
      %v449 = vmul.f32 %v386, %v445
      %v450 = vmul.f32 %v386, %v446
      %v451 = vmul.f32 %v386, %v447
      %v453 = vsel %vm364, %v448, 0
      %v456 = vsel %vm364, %v449, 0
      %v459 = vsel %vm364, %v450, 0
      %v462 = vsel %vm364, %v451, 0
      %v465 = vsel %vm364, %v414, 0
      %467 = vmatpush.xpose.msra.mxu0 0.0
      %468 = vmatpush.xpose.msra.mxu0 0.0
      %469 = vmatpush.xpose.msra.mxu0 0.0
      %470 = vmatpush.xpose.msra.mxu0 0.0
      %471 = vmatpush.xpose.msra.mxu0 0.0
      %472 = vmatpush.xpose.msra.mxu0 0.0
      %473 = vmatpush.xpose.msra.mxu0 0.0
      %474 = vmatpush.xpose.msra.mxu0 0.0
      %475 = vmatpush.xpose.msra.mxu0 0.0
      %476 = vmatpush.xpose.msra.mxu0 0.0
      %477 = vmatpush.xpose.msra.mxu0 0.0
      %478 = vmatpush.xpose.msra.mxu0 0.0
      %479 = vmatpush.xpose.msra.mxu0 0.0
      %480 = vmatpush.xpose.msra.mxu0 0.0
      %481 = vmatpush.xpose.msra.mxu0 0.0
      %482 = vmatpush.xpose.msra.mxu0 %v465
      %483 = vmatmul.f32.gmra.mxu0 %v453
      %v484 = vpop.f32.mrf.mxu0
      %v485 = vadd.f32 0.0, %v484
      %486 = vmatmul.f32.gmra.mxu0 %v456
      %v487 = vpop.f32.mrf.mxu0
      %v488 = vadd.f32 0.0, %v487
      %489 = vmatmul.f32.gmra.mxu0 %v459
      %v490 = vpop.f32.mrf.mxu0
      %v491 = vadd.f32 0.0, %v490
      %492 = vmatmul.f32.gmra.mxu0 %v462
      %v493 = vpop.f32.mrf.mxu0
      %v494 = vadd.f32 0.0, %v493
      %495 = vdwg.mxu0
      %vm496 = vcmask 64512
      %v497 = vsel %vm496, %v485, -inf
      %498 = vmax.xlane.f32.xlu0 %v497
      %v499 = vpop.xlane.xlu0 %498
      %v500 = vsel %vm496, %v488, -inf
      %501 = vmax.xlane.f32.xlu0 %v500
      %v502 = vpop.xlane.xlu0 %501
      %v503 = vsel %vm496, %v491, -inf
      %504 = vmax.xlane.f32.xlu0 %v503
      %v505 = vpop.xlane.xlu0 %504
      %v506 = vsel %vm496, %v494, -inf
      %507 = vmax.xlane.f32.xlu0 %v506
      %v508 = vpop.xlane.xlu0 %507
      %v509 = vsub.f32 %v485, %v499
      %v510 = vsub.f32 %v488, %v502
      %v511 = vsub.f32 %v491, %v505
      %v512 = vsub.f32 %v494, %v508
      %v513 = vmul.f32 %v509, 1.442695
      %v514 = vpow.pop %v513
      %v515 = vmul.f32 %v510, 1.442695
      %v516 = vpow.pop %v515
      %v517 = vmul.f32 %v511, 1.442695
      %v518 = vpow.pop %v517
      %v519 = vmul.f32 %v512, 1.442695
      %v520 = vpow.pop %v519
      %v521 = vsel %vm496, %v514, 0.0
      %522 = vadd.xlane.f32.xlu0 %v521
      %v523 = vpop.xlane.xlu0 %522
      %v524 = vsel %vm496, %v516, 0.0
      %525 = vadd.xlane.f32.xlu0 %v524
      %v526 = vpop.xlane.xlu0 %525
      %v527 = vsel %vm496, %v518, 0.0
      %528 = vadd.xlane.f32.xlu0 %v527
      %v529 = vpop.xlane.xlu0 %528
      %v530 = vsel %vm496, %v520, 0.0
      %531 = vadd.xlane.f32.xlu0 %v530
      %v532 = vpop.xlane.xlu0 %531
      %v533 = vrcp.pop %v523
      %v534 = vrcp.pop %v526
      %v535 = vrcp.pop %v529
      %v536 = vrcp.pop %v532
      %v537 = vmul.f32 %v514, %v533
      %v538 = vmul.f32 %v516, %v534
      %v539 = vmul.f32 %v518, %v535
      %v540 = vmul.f32 %v520, %v536
      %v542 = vsel %vm496, %v537, 0
      %v545 = vsel %vm496, %v538, 0
      %v548 = vsel %vm496, %v539, 0
      %v551 = vsel %vm496, %v540, 0
      %553 = vmatpush.msra.mxu0 0.0
      %554 = vmatpush.msra.mxu0 0.0
      %555 = vmatpush.msra.mxu0 0.0
      %556 = vmatpush.msra.mxu0 0.0
      %557 = vmatpush.msra.mxu0 0.0
      %558 = vmatpush.msra.mxu0 0.0
      %559 = vmatpush.msra.mxu0 0.0
      %560 = vmatpush.msra.mxu0 0.0
      %561 = vmatpush.msra.mxu0 0.0
      %562 = vmatpush.msra.mxu0 0.0
      %563 = vmatpush.msra.mxu0 0.0
      %564 = vmatpush.msra.mxu0 0.0
      %565 = vmatpush.msra.mxu0 0.0
      %566 = vmatpush.msra.mxu0 0.0
      %567 = vmatpush.msra.mxu0 0.0
      %568 = vmatpush.msra.mxu0 %v442
      %569 = vmatmul.f32.gmra.mxu0 %v542
      %v570 = vpop.f32.mrf.mxu0
      %v571 = vadd.f32 0.0, %v570
      %572 = vmatmul.f32.gmra.mxu0 %v545
      %v573 = vpop.f32.mrf.mxu0
      %v574 = vadd.f32 0.0, %v573
      %575 = vmatmul.f32.gmra.mxu0 %v548
      %v576 = vpop.f32.mrf.mxu0
      %v577 = vadd.f32 0.0, %v576
      %578 = vmatmul.f32.gmra.mxu0 %v551
      %v579 = vpop.f32.mrf.mxu0
      %v580 = vadd.f32 0.0, %v579
      %581 = vdwg.mxu0
      %v582 = vmul.f32 %v571, %v444
      %v583 = vmul.f32 %v574, %v445
      %v584 = vmul.f32 %v577, %v446
      %v585 = vmul.f32 %v580, %v447
      %v586 = vadd.f32 %v582, %v583
      %v587 = vadd.f32 %v586, %v584
      %v588 = vadd.f32 %v587, %v585
      %v589 = vld [vmem:[%s7] sm:$0xff]
      %v590 = vld [vmem:[%s7 + $0x8] sm:$0xff]
      %v591 = vld [vmem:[%s7 + $0x10] sm:$0xff]
      %v592 = vld [vmem:[%s7 + $0x18] sm:$0xff]
      %v593 = vld [vmem:[%s8] sm:$0x1]
      %v595 = vperm.slane %v593, 0
      %v598 = vsel %vm364, %v588, 0
      %600 = vmatpush.msra.mxu0 0.0
      %601 = vmatpush.msra.mxu0 0.0
      %602 = vmatpush.msra.mxu0 0.0
      %603 = vmatpush.msra.mxu0 0.0
      %604 = vmatpush.msra.mxu0 0.0
      %605 = vmatpush.msra.mxu0 0.0
      %606 = vmatpush.msra.mxu0 0.0
      %607 = vmatpush.msra.mxu0 0.0
      %608 = vmatpush.msra.mxu0 0.0
      %609 = vmatpush.msra.mxu0 0.0
      %610 = vmatpush.msra.mxu0 0.0
      %611 = vmatpush.msra.mxu0 0.0
      %612 = vmatpush.msra.mxu0 %v592
      %613 = vmatpush.msra.mxu0 %v591
      %614 = vmatpush.msra.mxu0 %v590
      %615 = vmatpush.msra.mxu0 %v589
      %616 = vmatmul.f32.gmra.mxu0 %v598
      %v617 = vpop.f32.mrf.mxu0
      %v618 = vadd.f32 %v595, %v617
      %619 = vdwg.mxu0
      %620 = vst.msk [vmem:[%s354] sm:$0xff] %vm364, %v618
      %p621 = scmp.lt.s32.totalorder %s21, 1
      %s622 = scalar_select %p621, %s21, 1
      %s623 = smul.addr %s622, 8
      %s624 = scalar_lea.vmem %s10, %s623
      // Predicated region
      $region61: #{msa_forward.1} parent=59 // pred_check
        %p625 = pneg %p254
      $region62: #{msa_forward.1} parent=59 // pred_check_branch
        %627 = sbr.rel (%p625) target = $region64
      $region63: #{msa_forward.1} parent=59 // pred_region
        _
      $region64: #{msa_forward.1} parent=59 // pred_fallthru
        _
    $region60: #{msa_forward.1} parent=5 // pred_fallthru
      _
    %p628 = scmp.le.s32.totalorder 2, %s16
    // Predicated region
    $region65: #{msa_forward.1} parent=5 // pred_check
      %p629 = pneg %p628
    $region66: #{msa_forward.1} parent=5 // pred_check_branch
      %631 = sbr.rel (%p629) target = $region68
    $region67: #{msa_forward.1} parent=5 // pred_region
      %s632 = ssub.s32 %s16, 2
      // Predicated region
      $region69: #{msa_forward.1} parent=67 // pred_check
        %p633 = pneg %p260
      $region70: #{msa_forward.1} parent=67 // pred_check_branch
        %635 = sbr.rel (%p633) target = $region72
      $region71: #{msa_forward.1} parent=67 // pred_region
        %p636 = scmp.lt.s32.totalorder %s22, 1
        %s637 = scalar_select %p636, %s22, 1
        %s638 = smul.addr %s637, 8
        %s639 = scalar_lea.vmem %s10, %s638
      $region72: #{msa_forward.1} parent=67 // pred_fallthru
        _
    $region68: #{msa_forward.1} parent=5 // pred_fallthru
      _
  $region6: #{msa_forward.1} parent=0 // loop_footer
    %s20 = sadd.s32 1, %s16
  $region7: #{msa_forward.1} parent=0 // loop_footer_branch
    %15 = sbr.rel target = $region3
  $region8: #{msa_forward.1} parent=0 // loop_exit
    _

</llo_original>
